<compile_context>
chip_gen: v5e
topology: v5e:2x2
jax: 0.10.0
libtpu: 0.0.40
codegen_flags: <defaults>
</compile_context>

<pallas_src>
import functools

import jax
import jax.numpy as jnp
from jax.experimental import pallas as pl
from jax.experimental.pallas import tpu as pltpu

_LANE = 128
_SUBLANE = 8


def _bce_sum_kernel(x_ref, t_ref, out_ref, *, blocks_per_split, total_rows,
                    needs_mask, single_log):
    """Accumulate sum(clamped BCE) of this tile into a (1, 8, 128) f32 out block."""
    c = pl.program_id(0)   # "parallel" split axis (feeds both TCs on v7x)
    i = pl.program_id(1)   # "arbitrary" reduction axis

    @pl.when(i == 0)
    def _():
        out_ref[...] = jnp.zeros_like(out_ref)

    p = x_ref[...].astype(jnp.float32)
    t = t_ref[...].astype(jnp.float32)

    if single_log:
        # Binary-target fast path: 1 EUP log per element instead of 2.
        p_t = jnp.where(t > 0.5, p, 1.0 - p)
        bce = -jnp.maximum(jnp.log(p_t), -100.0)
    else:
        # PyTorch's binary_cross_entropy clamps each log term at -100 before the
        # multiply (keeps t in {0,1} with p in {0,1} finite).
        log_p = jnp.maximum(jnp.log(p), -100.0)
        log_1mp = jnp.maximum(jnp.log1p(-p), -100.0)
        bce = -(t * log_p + (1.0 - t) * log_1mp)

    tile_rows = x_ref.shape[0]
    if needs_mask:
        # Rows past `total_rows` (partial boundary block / clamped duplicate block)
        # hold garbage. Keep this a select, NOT a multiply: garbage may be NaN/Inf.
        block = c * blocks_per_split + i
        row_ids = (jax.lax.broadcasted_iota(jnp.int32, bce.shape, 0)
                   + block * tile_rows)
        bce = jnp.where(row_ids < total_rows, bce, 0.0)

    # Per-step partial reduce into a single f32 vreg. Splitting the leading axis of
    # an (R, 128) f32 array never crosses an (8, 128) tile -> pure VPU adds; the
    # only cross-lane reduce happens once in the wrapper on (n_split, 8, 128).
    psum = bce.reshape(tile_rows // _SUBLANE, _SUBLANE, _LANE).sum(axis=0)
    out_ref[...] += psum[None, :, :]


def _bce_sum_jnp(p, t, single_log):
    """Plain-jnp clamped-BCE sum (used for the ragged <128-element tail)."""
    p = p.astype(jnp.float32)
    t = t.astype(jnp.float32)
    if single_log:
        p_t = jnp.where(t > 0.5, p, 1.0 - p)
        bce = -jnp.maximum(jnp.log(p_t), -100.0)
    else:
        bce = -(t * jnp.maximum(jnp.log(p), -100.0)
                + (1.0 - t) * jnp.maximum(jnp.log1p(-p), -100.0))
    return jnp.sum(bce)


def _tile_config():
    """Generation-aware (max_tile_rows, vmem_limit_bytes)."""
    try:
        kind = jax.devices()[0].device_kind.lower()
    except Exception:
        kind = ""
    if "v7" in kind:
        # 64 MiB physical VMEM per TC: 4 MiB f32 tiles + explicit scoped limit.
        return 8192, 48 * 1024 * 1024
    if "v6" in kind:
        # 128 MiB physical VMEM: 4 MiB f32 tiles, raise the 32 MiB scoped default.
        return 8192, 64 * 1024 * 1024
    # v5e (16 MiB scoped default) and unknown chips: 2 MiB f32 tiles already
    # saturate HBM there; bigger tiles only add OOM risk.
    return 4096, None


def focal_loss(inputs, targets, alpha=0.5, gamma=2, assume_binary_targets=False):
    """Pallas implementation of FocalLoss.forward (mean BCE -> focal transform).

    assume_binary_targets=True uses the single-log fast path; it is only exactly
    equivalent when every target is 0 or 1.
    """
    assert inputs.shape == targets.shape
    n = inputs.size
    x = inputs.reshape(-1)
    t = targets.reshape(-1)

    rows = n // _LANE
    aligned = rows * _LANE

    tail_sum = jnp.float32(0.0)
    if aligned != n:
        # Ragged (<128-element) tail: cheap plain-jnp reduction in the wrapper
        # instead of a full-array jnp.pad HBM copy.
        tail_sum = _bce_sum_jnp(x[aligned:], t[aligned:], assume_binary_targets)

    if rows == 0:
        total = tail_sum
    else:
        if aligned != n:
            # TODO(synk): a fully copy-free ragged path needs 1-D blocks with a
            # flat-index mask; this prefix slice only triggers off the (rare)
            # non-lane-aligned path.
            x = x[:aligned]
            t = t[:aligned]
        x2 = x.reshape(rows, _LANE)     # zero-copy reshape (contiguous, divisible)
        t2 = t.reshape(rows, _LANE)

        max_rows, vmem_limit = _tile_config()
        # Row multiple so the block shape is always legal: 8 rows for 4-byte,
        # 16 for 2-byte, 32 for 1-byte dtypes.
        min_item = min(jnp.dtype(x2.dtype).itemsize, jnp.dtype(t2.dtype).itemsize)
        row_mult = _SUBLANE * max(1, 4 // max(min_item, 1))
        tile_rows = min(max_rows, pl.cdiv(rows, row_mult) * row_mult)

        n_blocks = pl.cdiv(rows, tile_rows)
        n_split = 2 if n_blocks > 1 else 1      # use both TensorCores on v7x
        bpc = pl.cdiv(n_blocks, n_split)
        needs_mask = (n_split * bpc * tile_rows) != rows

        if n_split * bpc == n_blocks:
            def in_map(c, i):
                return (c * bpc + i, 0)
        else:
            def in_map(c, i):
                # Clamp so the DMA never walks past the last block; clamped
                # duplicate blocks are fully masked inside the kernel.
                return (jnp.minimum(c * bpc + i, n_blocks - 1), 0)

        kernel = functools.partial(
            _bce_sum_kernel,
            blocks_per_split=bpc,
            total_rows=rows,
            needs_mask=needs_mask,
            single_log=assume_binary_targets,
        )

        partials = pl.pallas_call(
            kernel,
            out_shape=jax.ShapeDtypeStruct((n_split, _SUBLANE, _LANE), jnp.float32),
            grid_spec=pltpu.PrefetchScalarGridSpec(
                num_scalar_prefetch=0,
                grid=(n_split, bpc),
                in_specs=[
                    pl.BlockSpec((tile_rows, _LANE), in_map),
                    pl.BlockSpec((tile_rows, _LANE), in_map),
                ],
                out_specs=pl.BlockSpec((1, _SUBLANE, _LANE), lambda c, i: (c, 0, 0)),
            ),
            compiler_params=pltpu.CompilerParams(
                dimension_semantics=("parallel", "arbitrary"),
                vmem_limit_bytes=vmem_limit,
            ),
        )(x2, t2)

        total = jnp.sum(partials) + tail_sum

    mean_bce = total / jnp.float32(n)
    bce_exp = jnp.exp(-mean_bce)
    return alpha * (1.0 - bce_exp) ** gamma * mean_bce


def _focal_loss_ref(inputs, targets, alpha=0.5, gamma=2, assume_binary_targets=False):
    mean_bce = _bce_sum_jnp(inputs.reshape(-1), targets.reshape(-1),
                            assume_binary_targets) / jnp.float32(inputs.size)
    bce_exp = jnp.exp(-mean_bce)
    return alpha * (1.0 - bce_exp) ** gamma * mean_bce


def _check(shape, key, dtype=jnp.float32, assume_binary_targets=False):
    k1, k2 = jax.random.split(key)
    inputs = jax.random.uniform(k1, shape, jnp.float32, 1e-4, 1.0 - 1e-4).astype(dtype)
    targets = (jax.random.uniform(k2, shape, jnp.float32) > 0.5).astype(jnp.float32)
    out = jax.block_until_ready(
        focal_loss(inputs, targets, assume_binary_targets=assume_binary_targets))
    ref = _focal_loss_ref(inputs, targets,
                          assume_binary_targets=assume_binary_targets)
    assert jnp.allclose(out, ref, rtol=1e-4, atol=1e-6), (shape, str(dtype), out, ref)


if __name__ == "__main__":
    key = jax.random.PRNGKey(0)
    ks = jax.random.split(key, 5)

    # NCHW, like the PyTorch module's (post-sigmoid) segmentation probabilities.
    _check((2, 4, 16, 16), ks[0])                                 # single aligned block
    _check((2, 3, 7, 11), ks[1])                                  # ragged <128-elem tail path
    _check((2, 4, 300, 300), ks[2])                               # multi/partial block + mask
    _check((2, 4, 300, 300), ks[3], dtype=jnp.bfloat16)           # bf16 inputs (bandwidth path)
    _check((2, 4, 300, 300), ks[4], assume_binary_targets=True)   # single-log fast path
    print("KERNEL_OK")
</pallas_src>

<mosaic_0001>
module attributes {stable_mosaic.version = 11 : i64} {
  func.func @_bce_sum_kernel(%arg0: i32, %arg1: i32, %arg2: memref<16x128xf32, #tpu.memory_space<vmem>>, %arg3: memref<16x128xf32, #tpu.memory_space<vmem>>, %arg4: memref<1x8x128xf32, #tpu.memory_space<vmem>>) attributes {dimension_semantics = [#tpu.dimension_semantics<parallel>, #tpu.dimension_semantics<arbitrary>], iteration_bounds = array<i64: 1, 1>, scalar_prefetch = 0 : i64, scratch_operands = 0 : i64, tpu.core_type = #tpu.core_type<tc>, window_params = [{transform_indices = @transform_0, window_bounds = array<i64: 16, 128>}, {transform_indices = @transform_1, window_bounds = array<i64: 16, 128>}, {transform_indices = @transform_2, window_bounds = array<i64: 1, 8, 128>}]} {
    %c0_i32 = arith.constant 0 : i32
    %0 = arith.cmpi eq, %arg1, %c0_i32 : i32
    %1 = arith.extui %0 : i1 to i32
    %c0_i32_0 = arith.constant 0 : i32
    %2 = arith.cmpi ne, %1, %c0_i32_0 : i32
    scf.if %2 {
      %cst_15 = arith.constant 0.000000e+00 : f32
      %26 = vector.broadcast %cst_15 : f32 to vector<1x8x128xf32>
      %c0_16 = arith.constant 0 : index
      %c0_17 = arith.constant 0 : index
      %c0_18 = arith.constant 0 : index
      %27 = vector.load %arg4[%c0_16, %c0_17, %c0_18] : memref<1x8x128xf32, #tpu.memory_space<vmem>>, vector<1x8x128xf32>
      tpu.vector_store %arg4[%c0_16, %c0_17, %c0_18], %26 {strides = array<i32>} : memref<1x8x128xf32, #tpu.memory_space<vmem>>, vector<1x8x128xf32>,
    } else {
    }
    %c0 = arith.constant 0 : index
    %c0_1 = arith.constant 0 : index
    %3 = vector.load %arg2[%c0, %c0_1] : memref<16x128xf32, #tpu.memory_space<vmem>>, vector<16x128xf32>
    %c0_2 = arith.constant 0 : index
    %c0_3 = arith.constant 0 : index
    %4 = vector.load %arg3[%c0_2, %c0_3] : memref<16x128xf32, #tpu.memory_space<vmem>>, vector<16x128xf32>
    %5 = math.log %3 : vector<16x128xf32>
    %cst = arith.constant -1.000000e+02 : f32
    %6 = vector.broadcast %cst : f32 to vector<16x128xf32>
    %7 = arith.maximumf %5, %6 : vector<16x128xf32>
    %cst_4 = arith.constant 0.000000e+00 : f32
    %8 = vector.broadcast %cst_4 : f32 to vector<16x128xf32>
    %9 = arith.subf %8, %3 : vector<16x128xf32>
    %10 = math.log1p %9 : vector<16x128xf32>
    %cst_5 = arith.constant -1.000000e+02 : f32
    %11 = vector.broadcast %cst_5 : f32 to vector<16x128xf32>
    %12 = arith.maximumf %10, %11 : vector<16x128xf32>
    %13 = arith.mulf %4, %7 : vector<16x128xf32>
    %cst_6 = arith.constant 1.000000e+00 : f32
    %14 = vector.broadcast %cst_6 : f32 to vector<16x128xf32>
    %15 = arith.subf %14, %4 : vector<16x128xf32>
    %16 = arith.mulf %15, %12 : vector<16x128xf32>
    %17 = arith.addf %13, %16 : vector<16x128xf32>
    %cst_7 = arith.constant 0.000000e+00 : f32
    %18 = vector.broadcast %cst_7 : f32 to vector<16x128xf32>
    %19 = arith.subf %18, %17 : vector<16x128xf32>
    %20 = vector.shape_cast %19 : vector<16x128xf32> to vector<2x8x128xf32>
    %cst_8 = arith.constant dense<0.000000e+00> : vector<8x128xf32>
    %21 = vector.multi_reduction <add>, %20, %cst_8 [0] : vector<2x8x128xf32> to vector<8x128xf32>
    %c0_9 = arith.constant 0 : index
    %c0_10 = arith.constant 0 : index
    %c0_11 = arith.constant 0 : index
    %22 = vector.load %arg4[%c0_9, %c0_10, %c0_11] : memref<1x8x128xf32, #tpu.memory_space<vmem>>, vector<1x8x128xf32>
    %23 = vector.shape_cast %21 : vector<8x128xf32> to vector<1x8x128xf32>
    %24 = arith.addf %22, %23 : vector<1x8x128xf32>
    %c0_12 = arith.constant 0 : index
    %c0_13 = arith.constant 0 : index
    %c0_14 = arith.constant 0 : index
    %25 = vector.load %arg4[%c0_12, %c0_13, %c0_14] : memref<1x8x128xf32, #tpu.memory_space<vmem>>, vector<1x8x128xf32>
    tpu.vector_store %arg4[%c0_12, %c0_13, %c0_14], %24 {strides = array<i32>} : memref<1x8x128xf32, #tpu.memory_space<vmem>>, vector<1x8x128xf32>,
    return
  }
  func.func @transform_0(%arg0: i32, %arg1: i32) -> (i32, i32) {
    %c1_i32 = arith.constant 1 : i32
    %0 = arith.muli %arg0, %c1_i32 : i32
    %1 = arith.addi %0, %arg1 : i32
    %c0_i32 = arith.constant 0 : i32
    %c0_i32_0 = arith.constant 0 : i32
    return %1, %c0_i32 : i32, i32
  }
  func.func @transform_1(%arg0: i32, %arg1: i32) -> (i32, i32) {
    %c1_i32 = arith.constant 1 : i32
    %0 = arith.muli %arg0, %c1_i32 : i32
    %1 = arith.addi %0, %arg1 : i32
    %c0_i32 = arith.constant 0 : i32
    %c0_i32_0 = arith.constant 0 : i32
    return %1, %c0_i32 : i32, i32
  }
  func.func @transform_2(%arg0: i32, %arg1: i32) -> (i32, i32, i32) {
    %c0_i32 = arith.constant 0 : i32
    %c0_i32_0 = arith.constant 0 : i32
    %c0_i32_1 = arith.constant 0 : i32
    return %arg0, %c0_i32, %c0_i32_0 : i32, i32, i32
  }
}

</mosaic_0001>

<llo_original>
// kernel: tpu_custom_call.1
$region0: #{tpu_custom_call.1}
  #allocation0 [shape = 'u32[]', space=smem, size = 0x4, offset = 0x4, fixed_abs, tag = 'smem constant byte address 0x4 - core index']
  #allocation1 [shape = 'u32[72,128]{1,0:T(1,128)}', space=vmem, size = 0x9000, scoped, tag = 'internal scratch']
  %s0 = inlined_call_operand.hbm [shape: f32[16,128], index: 0, kind: input, shape index: {}]
  %s1 = inlined_call_operand.hbm [shape: f32[16,128], index: 1, kind: input, shape index: {}]
  %s2 = inlined_call_operand.hbm [shape: f32[1,8,128], index: 2, kind: output, shape index: {}]
  %s3 = sld [smem:[#allocation0]]
  $region30: #{tpu_custom_call.1} parent=0
    _
  %s5 = ssub.s32 1, %s3
  %s6 = scalar_select 0, %s5, %s3
  $region1: #{tpu_custom_call.1} parent=0
    #allocation2 [shape = 'u8[8192]{0}', space=vmem, size = 0x2000, scoped, tag = 'input window, operand 0, single buffered']
    #allocation3 [shape = 's32[1]{0}', space=sflag, size = 0x4, scoped, tag = 'scoped memory for tpu_custom_call.1']
    #allocation4 [shape = 's32[1]{0}', space=sflag, size = 0x4, scoped, tag = 'scoped memory for tpu_custom_call.1']
    #allocation5 [shape = 'u8[8192]{0}', space=vmem, size = 0x2000, scoped, tag = 'input window, operand 1, single buffered']
    #allocation6 [shape = 's32[1]{0}', space=sflag, size = 0x4, scoped, tag = 'scoped memory for tpu_custom_call.1']
    #allocation7 [shape = 'u8[4096]{0}', space=vmem, size = 0x1000, scoped, tag = 'output window, operand 0, single buffered']
    %7 = vsyncpa [#allocation3], 0
    %8 = vsyncpa [#allocation6], 0
    %9 = vsyncpa [#allocation4], 0
    // Predicated region
    $region2: #{tpu_custom_call.1} parent=1 // pred_check
      _
    $region3: #{tpu_custom_call.1} parent=1 // pred_check_branch
      %11 = sbr.rel (0) target = $region5
    $region4: #{tpu_custom_call.1} parent=1 // pred_region
      %s12 = sadd.s32 0, 0
      %s13 = smul.u32 2, %s12
      %15 = vsyncadd [#allocation3], 0
      %s16 = smul.addr %s13, 8
      %s17 = scalar_lea.hbm %s0, %s16
      %s18 = sshll.u32 %s17, 4
      %s19 = int_to_ptr.hbm [resolvable:$true] %s18
      %s20 = sshll.u32 [#allocation2], 4
      %s21 = int_to_ptr.vmem [resolvable:$true] %s20
      %26 = dma.hbm_to_vmem [thread:$0]  %s19, 256, %s21, [#allocation3], 128, 128, 8
    $region5: #{tpu_custom_call.1} parent=1 // pred_fallthru
      _
    // Predicated region
    $region6: #{tpu_custom_call.1} parent=1 // pred_check
      _
    $region7: #{tpu_custom_call.1} parent=1 // pred_check_branch
      %28 = sbr.rel (0) target = $region9
    $region8: #{tpu_custom_call.1} parent=1 // pred_region
      %s29 = sadd.s32 0, 0
      %s30 = smul.u32 2, %s29
      %32 = vsyncadd [#allocation6], 0
      %s33 = smul.addr %s30, 8
      %s34 = scalar_lea.hbm %s1, %s33
      %s35 = sshll.u32 %s34, 4
      %s36 = int_to_ptr.hbm [resolvable:$true] %s35
      %s37 = sshll.u32 [#allocation5], 4
      %s38 = int_to_ptr.vmem [resolvable:$true] %s37
      %43 = dma.hbm_to_vmem [thread:$0]  %s36, 256, %s38, [#allocation6], 128, 128, 8
    $region9: #{tpu_custom_call.1} parent=1 // pred_fallthru
      _
    // Predicated region
    $region10: #{tpu_custom_call.1} parent=1 // pred_check
      _
    $region11: #{tpu_custom_call.1} parent=1 // pred_check_branch
      %45 = sbr.rel (0) target = $region13
    $region12: #{tpu_custom_call.1} parent=1 // pred_region
      %47 = dma.done [#allocation3], 256
    $region13: #{tpu_custom_call.1} parent=1 // pred_fallthru
      _
    // Predicated region
    $region14: #{tpu_custom_call.1} parent=1 // pred_check
      _
    $region15: #{tpu_custom_call.1} parent=1 // pred_check_branch
      %49 = sbr.rel (0) target = $region17
    $region16: #{tpu_custom_call.1} parent=1 // pred_region
      %51 = dma.done [#allocation6], 256
    $region17: #{tpu_custom_call.1} parent=1 // pred_fallthru
      _
    %s52 = sadd.s32 0, 0
    %s53 = smul.u32 2, %s52
    %s54 = sadd.s32 0, 0
    %s55 = smul.u32 2, %s54
    %p56 = scmp.eq.s32.totalorder 0, 0
    // Predicated region
    $region18: #{tpu_custom_call.1} parent=1 // pred_check
      %p57 = pneg %p56
    $region19: #{tpu_custom_call.1} parent=1 // pred_check_branch
      %59 = sbr.rel (%p57) target = $region21
    $region20: #{tpu_custom_call.1} parent=1 // pred_region
      %60 = vst [vmem:[#allocation7] sm:$0xff] 0.0
    $region21: #{tpu_custom_call.1} parent=1 // pred_fallthru
      _
    %v61 = vld [vmem:[#allocation2] sm:$0xff]
    %v62 = vld [vmem:[#allocation2 + $0x8] sm:$0xff]
    %v63 = vld [vmem:[#allocation5] sm:$0xff]
    %v64 = vld [vmem:[#allocation5 + $0x8] sm:$0xff]
    %v65 = vlog2.pop %v61
    %v66 = vmul.f32 %v65, 0.6931472
    %v67 = vlog2.pop %v62
    %v68 = vmul.f32 %v67, 0.6931472
    %v69 = vmax.f32 %v66, -100.0
    %v70 = vmax.f32 %v68, -100.0
    %v71 = vsub.f32 0.0, %v61
    %v72 = vsub.f32 0.0, %v62
    %v73 = vadd.f32 %v71, 1.0
    %v74 = vlog2.pop %v73
    %v75 = vmul.f32 %v74, 0.6931472
    %v76 = vmul.f32 -0.5, %v71
    %v77 = vadd.f32 %v76, 1.0
    %v78 = vmul.f32 %v77, %v71
    %v79 = vand.u32 2147483647, %v71
    %vm80 = vcmp.lt.f32.partialorder %v79, 0.0004427343
    %v81 = vsel %vm80, %v78, %v75
    %v82 = vadd.f32 %v72, 1.0
    %v83 = vlog2.pop %v82
    %v84 = vmul.f32 %v83, 0.6931472
    %v85 = vmul.f32 -0.5, %v72
    %v86 = vadd.f32 %v85, 1.0
    %v87 = vmul.f32 %v86, %v72
    %v88 = vand.u32 2147483647, %v72
    %vm89 = vcmp.lt.f32.partialorder %v88, 0.0004427343
    %v90 = vsel %vm89, %v87, %v84
    %v91 = vmax.f32 %v81, -100.0
    %v92 = vmax.f32 %v90, -100.0
    %v93 = vmul.f32 %v63, %v69
    %v94 = vmul.f32 %v64, %v70
    %v95 = vsub.f32 1.0, %v63
    %v96 = vsub.f32 1.0, %v64
    %v97 = vmul.f32 %v95, %v91
    %v98 = vmul.f32 %v96, %v92
    %v99 = vadd.f32 %v93, %v97
    %v100 = vadd.f32 %v94, %v98
    %v101 = vsub.f32 0.0, %v99
    %v102 = vsub.f32 0.0, %v100
    %v103 = vadd.f32 %v101, %v102
    %v104 = vld [vmem:[#allocation7] sm:$0xff]
    %v105 = vadd.f32 %v104, %v103
    %106 = vst [vmem:[#allocation7] sm:$0xff] %v105
    // Predicated region
    $region22: #{tpu_custom_call.1} parent=1 // pred_check
      _
    $region23: #{tpu_custom_call.1} parent=1 // pred_check_branch
      %108 = sbr.rel (0) target = $region25
    $region24: #{tpu_custom_call.1} parent=1 // pred_region
      %110 = vsyncadd [#allocation4], 0
      %s112 = sshll.u32 [#allocation7], 4
      %s113 = int_to_ptr.vmem [resolvable:$true] %s112
      %s114 = sshll.u32 %s2, 4
      %s115 = int_to_ptr.hbm [resolvable:$true] %s114
      %117 = dma.vmem_to_hbm [thread:$0]  %s113, 128, %s115, [#allocation4]
    $region25: #{tpu_custom_call.1} parent=1 // pred_fallthru
      _
    // Predicated region
    $region26: #{tpu_custom_call.1} parent=1 // pred_check
      _
    $region27: #{tpu_custom_call.1} parent=1 // pred_check_branch
      %119 = sbr.rel (0) target = $region29
    $region28: #{tpu_custom_call.1} parent=1 // pred_region
      %121 = dma.done [#allocation4], 128
    $region29: #{tpu_custom_call.1} parent=1 // pred_fallthru
      _
    %122 = vsyncpa [#allocation3], 1
    %123 = vsyncpa [#allocation6], 1
    %124 = vsyncpa [#allocation4], 1

</llo_original>
